<compile_context>
chip_gen: v5e
topology: v5e:2x2
jax: 0.10.0
libtpu: 0.0.40
codegen_flags: <defaults>
</compile_context>

<pallas_src>
import functools

import jax
import jax.numpy as jnp
from jax.experimental import pallas as pl
from jax.experimental.pallas import tpu as pltpu


def _text_masking_kernel(seq_ref, rand_ref, out_ref, *,
                         threshold_u32, mask_token_id, mask_ignored_ids):
    seq = seq_ref[...]                                   # [TB, TS] int32
    # torch.rand(...) < mask_prob  ==  raw_u32_bits < round(mask_prob * 2^32)
    random_mask = rand_ref[...] < jnp.uint32(threshold_u32)

    if mask_ignored_ids:
        allowed = seq != jnp.int32(mask_ignored_ids[0])
        for ignored_id in mask_ignored_ids[1:]:
            allowed = allowed & (seq != jnp.int32(ignored_id))
        mask = allowed & random_mask
    else:
        mask = random_mask

    out_ref[...] = jnp.where(mask, jnp.int32(mask_token_id), seq)


def _pick_block(dim, target, align):
    """Largest multiple of `align` that divides `dim` and is <= target.

    Falls back to the full extent (always legal for a BlockSpec) when the
    dimension is small or not alignable."""
    if dim <= target or dim % align != 0:
        return dim
    best = None
    cand = align
    while cand <= target:
        if dim % cand == 0:
            best = cand
        cand += align
    return best if best is not None else dim


def text_masking(seq, key, *, mask_prob, mask_token_id,
                 mask_ignored_ids=(), training=True,
                 block_rows=256, block_cols=2048):
    """Pallas equivalent of TextMasking.forward.

    `key` is a jax.random key supplying the randomness (the torch.rand call
    of the reference module)."""
    if (not training) or mask_prob <= 0.0:
        return seq

    B, S = seq.shape
    # One uint32 of raw randomness per token, generated with the standard JAX
    # PRNG outside the kernel (portable to interpret mode / all TPU gens).
    rand = jax.random.bits(key, (B, S), dtype=jnp.uint32)

    # Integer threshold: P(u32 < t) == t / 2^32 == mask_prob (exact, no 24-bit
    # truncation bias).
    threshold_u32 = min(int(round(float(mask_prob) * (1 << 32))), (1 << 32) - 1)

    # Lane-dense, VMEM-friendly tiles. int32 min tile is (8, 128). Default
    # block = (256, 2048) int32 = 2 MiB, so 3 arrays x 2 double-buffers =
    # 12 MiB — comfortably under the 32 MiB scoped VMEM on v6e and v7x.
    TB = _pick_block(B, block_rows, 8)
    TS = _pick_block(S, block_cols, 128)
    grid = (B // TB, S // TS)

    kernel = functools.partial(
        _text_masking_kernel,
        threshold_u32=threshold_u32,
        mask_token_id=int(mask_token_id),
        mask_ignored_ids=tuple(int(i) for i in mask_ignored_ids),
    )

    return pl.pallas_call(
        kernel,
        out_shape=jax.ShapeDtypeStruct((B, S), seq.dtype),
        grid=grid,
        in_specs=[
            pl.BlockSpec((TB, TS), lambda i, j: (i, j)),   # token ids
            pl.BlockSpec((TB, TS), lambda i, j: (i, j)),   # random uint32 bits
        ],
        out_specs=pl.BlockSpec((TB, TS), lambda i, j: (i, j)),
        compiler_params=pltpu.CompilerParams(
            dimension_semantics=("parallel", "parallel")),
    )(seq, rand)


if __name__ == "__main__":
    # Module "parameters" (deterministic, in-script; no checkpoint load).
    MASK_PROB = 0.25
    MASK_TOKEN_ID = 103               # e.g. BERT [MASK]
    MASK_IGNORED_IDS = [0, 101, 102]  # pad, [CLS], [SEP]

    root = jax.random.PRNGKey(0)
    k_tok, k_pad, k_mask = jax.random.split(root, 3)

    B, S = 8, 256  # small, (8, 128)-aligned token-id grid
    seq = jax.random.randint(k_tok, (B, S), 0, 30000, dtype=jnp.int32)
    # Sprinkle some ignored ids so the ignore path is exercised.
    seq = seq.at[:, 0].set(101)       # [CLS] at position 0
    seq = seq.at[:, S - 1].set(102)   # [SEP] at last position
    pad_sel = jax.random.uniform(k_pad, (B, S - S // 2)) < 0.3
    seq = seq.at[:, S // 2:].set(jnp.where(pad_sel, 0, seq[:, S // 2:]))

    out = text_masking(seq, k_mask,
                       mask_prob=MASK_PROB,
                       mask_token_id=MASK_TOKEN_ID,
                       mask_ignored_ids=MASK_IGNORED_IDS,
                       training=True)
    out = jax.block_until_ready(out)

    # --- correctness checks -------------------------------------------------
    seq_np = jax.device_get(seq)
    out_np = jax.device_get(out)

    # Exact pure-JAX reference using the same random bits.
    rand_ref = jax.device_get(jax.random.bits(k_mask, (B, S), dtype=jnp.uint32))
    thr = min(int(round(MASK_PROB * (1 << 32))), (1 << 32) - 1)
    allowed = (seq_np != MASK_IGNORED_IDS[0])
    for iid in MASK_IGNORED_IDS[1:]:
        allowed &= (seq_np != iid)
    ref_mask = allowed & (rand_ref < thr)
    ref_out = seq_np.copy()
    ref_out[ref_mask] = MASK_TOKEN_ID
    assert (out_np == ref_out).all(), "kernel output differs from reference"

    changed = out_np != seq_np
    # Every changed position must now hold the mask token.
    assert (out_np[changed] == MASK_TOKEN_ID).all()
    # Ignored ids must never be masked.
    for iid in MASK_IGNORED_IDS:
        assert not changed[seq_np == iid].any()
    # Eval mode is a passthrough.
    out_eval = text_masking(seq, k_mask, mask_prob=MASK_PROB,
                            mask_token_id=MASK_TOKEN_ID,
                            mask_ignored_ids=MASK_IGNORED_IDS, training=False)
    assert (jax.device_get(out_eval) == seq_np).all()

    print("KERNEL_OK")
</pallas_src>

<mosaic_0001>
module attributes {stable_mosaic.version = 11 : i64} {
  func.func @_text_masking_kernel(%arg0: i32, %arg1: i32, %arg2: memref<8x256xi32, #tpu.memory_space<vmem>>, %arg3: memref<8x256xi32, #tpu.memory_space<vmem>>, %arg4: memref<8x256xi32, #tpu.memory_space<vmem>>) attributes {dimension_semantics = [#tpu.dimension_semantics<parallel>, #tpu.dimension_semantics<parallel>], iteration_bounds = array<i64: 1, 1>, scalar_prefetch = 0 : i64, scratch_operands = 0 : i64, tpu.core_type = #tpu.core_type<tc>, window_params = [{transform_indices = @transform_0, window_bounds = array<i64: 8, 256>}, {transform_indices = @transform_1, window_bounds = array<i64: 8, 256>}, {transform_indices = @transform_2, window_bounds = array<i64: 8, 256>}]} {
    %c0 = arith.constant 0 : index
    %c0_0 = arith.constant 0 : index
    %0 = vector.load %arg2[%c0, %c0_0] : memref<8x256xi32, #tpu.memory_space<vmem>>, vector<8x256xi32>
    %c0_1 = arith.constant 0 : index
    %c0_2 = arith.constant 0 : index
    %1 = vector.load %arg3[%c0_1, %c0_2] : memref<8x256xi32, #tpu.memory_space<vmem>>, vector<8x256xi32>
    %c1073741824_i32 = arith.constant 1073741824 : i32
    %2 = vector.broadcast %c1073741824_i32 : i32 to vector<8x256xi32>
    %3 = arith.cmpi ult, %1, %2 : vector<8x256xi32>
    %c0_i32 = arith.constant 0 : i32
    %4 = vector.broadcast %c0_i32 : i32 to vector<8x256xi32>
    %5 = arith.cmpi ne, %0, %4 : vector<8x256xi32>
    %c101_i32 = arith.constant 101 : i32
    %6 = vector.broadcast %c101_i32 : i32 to vector<8x256xi32>
    %7 = arith.cmpi ne, %0, %6 : vector<8x256xi32>
    %8 = arith.andi %5, %7 : vector<8x256xi1>
    %c102_i32 = arith.constant 102 : i32
    %9 = vector.broadcast %c102_i32 : i32 to vector<8x256xi32>
    %10 = arith.cmpi ne, %0, %9 : vector<8x256xi32>
    %11 = arith.andi %8, %10 : vector<8x256xi1>
    %12 = arith.andi %11, %3 : vector<8x256xi1>
    %c103_i32 = arith.constant 103 : i32
    %13 = vector.broadcast %c103_i32 : i32 to vector<8x256xi32>
    %14 = arith.select %12, %13, %0 : vector<8x256xi1>, vector<8x256xi32>
    %c0_3 = arith.constant 0 : index
    %c0_4 = arith.constant 0 : index
    %15 = vector.load %arg4[%c0_3, %c0_4] : memref<8x256xi32, #tpu.memory_space<vmem>>, vector<8x256xi32>
    tpu.vector_store %arg4[%c0_3, %c0_4], %14 {strides = array<i32>} : memref<8x256xi32, #tpu.memory_space<vmem>>, vector<8x256xi32>,
    return
  }
  func.func @transform_0(%arg0: i32, %arg1: i32) -> (i32, i32) {
    %c0_i32 = arith.constant 0 : i32
    return %arg0, %arg1 : i32, i32
  }
  func.func @transform_1(%arg0: i32, %arg1: i32) -> (i32, i32) {
    %c0_i32 = arith.constant 0 : i32
    return %arg0, %arg1 : i32, i32
  }
  func.func @transform_2(%arg0: i32, %arg1: i32) -> (i32, i32) {
    %c0_i32 = arith.constant 0 : i32
    return %arg0, %arg1 : i32, i32
  }
}

</mosaic_0001>

<llo_original>
// kernel: tpu_custom_call.1
$region0: #{tpu_custom_call.1}
  #allocation0 [shape = 'u32[]', space=smem, size = 0x4, offset = 0x4, fixed_abs, tag = 'smem constant byte address 0x4 - core index']
  #allocation1 [shape = 'u32[72,128]{1,0:T(1,128)}', space=vmem, size = 0x9000, scoped, tag = 'internal scratch']
  %s0 = inlined_call_operand.hbm [shape: s32[8,256], index: 0, kind: input, shape index: {}]
  %s1 = inlined_call_operand.hbm [shape: u32[8,256], index: 1, kind: input, shape index: {}]
  %s2 = inlined_call_operand.hbm [shape: s32[8,256], index: 2, kind: output, shape index: {}]
  %s3 = sld [smem:[#allocation0]]
  $region26: #{tpu_custom_call.1} parent=0
    _
  %s5 = ssub.s32 1, %s3
  %s6 = scalar_select 0, %s5, %s3
  $region1: #{tpu_custom_call.1} parent=0
    #allocation2 [shape = 'u8[8192]{0}', space=vmem, size = 0x2000, scoped, tag = 'input window, operand 0, single buffered']
    #allocation3 [shape = 's32[1]{0}', space=sflag, size = 0x4, scoped, tag = 'scoped memory for tpu_custom_call.1']
    #allocation4 [shape = 's32[1]{0}', space=sflag, size = 0x4, scoped, tag = 'scoped memory for tpu_custom_call.1']
    #allocation5 [shape = 'u8[8192]{0}', space=vmem, size = 0x2000, scoped, tag = 'input window, operand 1, single buffered']
    #allocation6 [shape = 's32[1]{0}', space=sflag, size = 0x4, scoped, tag = 'scoped memory for tpu_custom_call.1']
    #allocation7 [shape = 'u8[8192]{0}', space=vmem, size = 0x2000, scoped, tag = 'output window, operand 0, single buffered']
    %7 = vsyncpa [#allocation3], 0
    %8 = vsyncpa [#allocation6], 0
    %9 = vsyncpa [#allocation4], 0
    // Predicated region
    $region2: #{tpu_custom_call.1} parent=1 // pred_check
      _
    $region3: #{tpu_custom_call.1} parent=1 // pred_check_branch
      %11 = sbr.rel (0) target = $region5
    $region4: #{tpu_custom_call.1} parent=1 // pred_region
      %13 = vsyncadd [#allocation3], 0
      %s15 = sshll.u32 %s0, 4
      %s16 = int_to_ptr.hbm [resolvable:$true] %s15
      %s17 = sshll.u32 [#allocation2], 4
      %s18 = int_to_ptr.vmem [resolvable:$true] %s17
      %20 = dma.hbm_to_vmem [thread:$0]  %s16, 256, %s18, [#allocation3]
    $region5: #{tpu_custom_call.1} parent=1 // pred_fallthru
      _
    // Predicated region
    $region6: #{tpu_custom_call.1} parent=1 // pred_check
      _
    $region7: #{tpu_custom_call.1} parent=1 // pred_check_branch
      %22 = sbr.rel (0) target = $region9
    $region8: #{tpu_custom_call.1} parent=1 // pred_region
      %24 = vsyncadd [#allocation6], 0
      %s26 = sshll.u32 %s1, 4
      %s27 = int_to_ptr.hbm [resolvable:$true] %s26
      %s28 = sshll.u32 [#allocation5], 4
      %s29 = int_to_ptr.vmem [resolvable:$true] %s28
      %31 = dma.hbm_to_vmem [thread:$0]  %s27, 256, %s29, [#allocation6]
    $region9: #{tpu_custom_call.1} parent=1 // pred_fallthru
      _
    // Predicated region
    $region10: #{tpu_custom_call.1} parent=1 // pred_check
      _
    $region11: #{tpu_custom_call.1} parent=1 // pred_check_branch
      %33 = sbr.rel (0) target = $region13
    $region12: #{tpu_custom_call.1} parent=1 // pred_region
      %35 = dma.done [#allocation3], 256
    $region13: #{tpu_custom_call.1} parent=1 // pred_fallthru
      _
    // Predicated region
    $region14: #{tpu_custom_call.1} parent=1 // pred_check
      _
    $region15: #{tpu_custom_call.1} parent=1 // pred_check_branch
      %37 = sbr.rel (0) target = $region17
    $region16: #{tpu_custom_call.1} parent=1 // pred_region
      %39 = dma.done [#allocation6], 256
    $region17: #{tpu_custom_call.1} parent=1 // pred_fallthru
      _
    %v40 = vld [vmem:[#allocation2] sm:$0xff]
    %v41 = vld [vmem:[#allocation2 + $0x8] sm:$0xff]
    %v42 = vld [vmem:[#allocation5] sm:$0xff]
    %v43 = vld [vmem:[#allocation5 + $0x8] sm:$0xff]
    %v44 = vadd.s32 %v42, 2147483648
    %vm46 = vcmp.lt.s32.totalorder %v44, 3221225472
    %v47 = vadd.s32 %v43, 2147483648
    %vm49 = vcmp.lt.s32.totalorder %v47, 3221225472
    %vm50 = vcmp.ne.s32.totalorder %v40, 0
    %vm51 = vcmp.ne.s32.totalorder %v41, 0
    %vm52 = vcmp.ne.s32.totalorder %v40, 101
    %vm53 = vcmp.ne.s32.totalorder %v41, 101
    %vm54 = vmand %vm50, %vm52
    %vm55 = vmand %vm51, %vm53
    %vm56 = vcmp.ne.s32.totalorder %v40, 102
    %vm57 = vcmp.ne.s32.totalorder %v41, 102
    %vm58 = vmand %vm54, %vm56
    %vm59 = vmand %vm55, %vm57
    %vm60 = vmand %vm58, %vm46
    %vm61 = vmand %vm59, %vm49
    %v62 = vsel %vm60, 103, %v40
    %v63 = vsel %vm61, 103, %v41
    %64 = vst [vmem:[#allocation7] sm:$0xff] %v62
    %65 = vst [vmem:[#allocation7 + $0x8] sm:$0xff] %v63
    // Predicated region
    $region18: #{tpu_custom_call.1} parent=1 // pred_check
      _
    $region19: #{tpu_custom_call.1} parent=1 // pred_check_branch
      %67 = sbr.rel (0) target = $region21
    $region20: #{tpu_custom_call.1} parent=1 // pred_region
      %69 = vsyncadd [#allocation4], 0
      %s71 = sshll.u32 [#allocation7], 4
      %s72 = int_to_ptr.vmem [resolvable:$true] %s71
      %s73 = sshll.u32 %s2, 4
      %s74 = int_to_ptr.hbm [resolvable:$true] %s73
      %76 = dma.vmem_to_hbm [thread:$0]  %s72, 256, %s74, [#allocation4]
    $region21: #{tpu_custom_call.1} parent=1 // pred_fallthru
      _
    // Predicated region
    $region22: #{tpu_custom_call.1} parent=1 // pred_check
      _
    $region23: #{tpu_custom_call.1} parent=1 // pred_check_branch
      %78 = sbr.rel (0) target = $region25
    $region24: #{tpu_custom_call.1} parent=1 // pred_region
      %80 = dma.done [#allocation4], 256
    $region25: #{tpu_custom_call.1} parent=1 // pred_fallthru
      _
    %81 = vsyncpa [#allocation3], 1
    %82 = vsyncpa [#allocation6], 1
    %83 = vsyncpa [#allocation4], 1

</llo_original>
